<compile_context>
chip_gen: v6e
topology: v6e:2x2x1
jax: 0.10.0
libtpu: 0.0.40
codegen_flags: <defaults>
</compile_context>

<pallas_src>
import functools

import jax
import jax.numpy as jnp
from jax.experimental import pallas as pl
from jax.experimental.pallas import tpu as pltpu


def make_divisible(v, divisor, min_value=None):
    """Same channel-rounding rule as the PyTorch module."""
    if min_value is None:
        min_value = divisor
    new_v = max(min_value, int(v + divisor / 2) // divisor * divisor)
    if new_v < 0.9 * v:
        new_v += divisor
    return new_v


def _round_up(x, m):
    return (x + m - 1) // m * m


# --------------------------------------------------------------------------------------
# Fused kernel body (shared by the no-grid and per-image-grid paths)
# --------------------------------------------------------------------------------------

def _se_kernel(x_ref, p_ref, o_ref, *, C, Cr, use_mxu):
    """x_ref / o_ref: (Bblk, C, HWp)  -- NCHW with spatial flattened onto the lane axis.
    p_ref: packed parameter slab (rows_p, cols_p), zero lane-padded, layout:
      rows [0, C)        : conv_reduce weight, transposed, pre-scaled by 1/HW   (C, Cr)
      row   C            : conv_reduce bias                                     (Cr,)
      rows [C+1, C+1+Cr) : conv_expand weight, transposed                       (Cr, C)
      row   C+1+Cr       : conv_expand bias                                     (C,)
    """
    x = x_ref[...]                                            # (Bblk, C, HWp)

    # ---- squeeze: raw lane-sum pool (1/HW folded into the reduce weight) ----
    pooled = jnp.sum(x, axis=2)                               # (Bblk, C)

    # Static slices of the packed slab: zero-cost ref views.
    wr = p_ref[0:C, 0:Cr]                                     # (C, Cr), already * 1/HW
    br = p_ref[C:C + 1, 0:Cr]                                 # (1, Cr)
    we = p_ref[C + 1:C + 1 + Cr, 0:C]                         # (Cr, C)
    be = p_ref[C + 1 + Cr:C + 2 + Cr, 0:C]                    # (1, C)

    if use_mxu:
        # Real GhostNet SE widths (C = 480/672/960): a few vmatmul pushes beat a
        # C-deep cross-sublane reduce + (B, C, Cr) intermediate.
        r = jnp.dot(pooled, wr, preferred_element_type=jnp.float32) + br
        r = jnp.maximum(r, 0.0)
        e = jnp.dot(r, we, preferred_element_type=jnp.float32) + be
    else:
        # Tiny C: VPU broadcast-FMA + short reduce, skip MXU push/pop latency.
        r = jnp.sum(pooled[:, :, None] * wr[None, :, :], axis=1) + br
        r = jnp.maximum(r, 0.0)
        e = jnp.sum(r[:, :, None] * we[None, :, :], axis=1) + be

    # ---- hard_sigmoid gate: relu6(x + 3) / 6 ----
    gate = jnp.clip(e + 3.0, 0.0, 6.0) * (1.0 / 6.0)          # (Bblk, C)

    # ---- excite: one vld + one vmul + one vst per vreg (keeps v5e's single store slot
    # at its floor; no second pass over the tile) ----
    o_ref[...] = x * gate[:, :, None]


# --------------------------------------------------------------------------------------
# Wrapper
# --------------------------------------------------------------------------------------

@functools.partial(jax.jit, static_argnames=("force_grid",))
def ghost_bottleneck_se(x_nchw, w_reduce, b_reduce, w_expand, b_expand, *, force_grid=False):
    """Fused GhostBottleneckSE forward.

    x_nchw   : (B, C, H, W) float32
    w_reduce : (Cr, C) or (Cr, C, 1, 1)   -- PyTorch conv_reduce.weight layout
    b_reduce : (Cr,)
    w_expand : (C, Cr) or (C, Cr, 1, 1)   -- PyTorch conv_expand.weight layout
    b_expand : (C,)
    """
    B, C, H, W = x_nchw.shape
    HW = H * W
    w_reduce = w_reduce.reshape(w_reduce.shape[0], w_reduce.shape[1]).astype(jnp.float32)
    w_expand = w_expand.reshape(w_expand.shape[0], w_expand.shape[1]).astype(jnp.float32)
    Cr = w_reduce.shape[0]

    # Lane-dense spatial axis: zero-pad H*W up to a multiple of 128 (pad lanes contribute
    # 0 to the pooled sum and come out as 0 * gate; sliced off afterwards).
    HWp = max(128, _round_up(HW, 128))
    x3 = x_nchw.reshape(B, C, HW).astype(jnp.float32)
    if HWp != HW:
        x3 = jnp.pad(x3, ((0, 0), (0, 0), (0, HWp - HW)))

    # Pack all four tiny parameters into ONE padded slab -> a single DMA.
    rows = C + Cr + 2
    rows_p = _round_up(rows, 8)
    cols_p = max(128, _round_up(max(C, Cr), 128))
    slab = jnp.zeros((rows_p, cols_p), jnp.float32)
    slab = slab.at[0:C, 0:Cr].set(w_reduce.T * (1.0 / HW))      # fold mean's 1/HW here
    slab = slab.at[C, 0:Cr].set(b_reduce.astype(jnp.float32))
    slab = slab.at[C + 1:C + 1 + Cr, 0:C].set(w_expand.T)
    slab = slab.at[C + 1 + Cr, 0:C].set(b_expand.astype(jnp.float32))

    use_mxu = C > 64
    kernel = functools.partial(_se_kernel, C=C, Cr=Cr, use_mxu=use_mxu)

    cost = pl.CostEstimate(
        flops=int(2 * B * C * HWp + 4 * B * C * Cr),
        bytes_accessed=int((2 * B * C * HWp + rows_p * cols_p) * 4),
        transcendentals=0,
    )

    out_shape = jax.ShapeDtypeStruct((B, C, HWp), jnp.float32)

    # Size-gate the structure: whole-batch single step while residency is tiny; otherwise
    # grid over batch (double-buffered, VMEM bounded to ~2 images, parallel on v7x's 2 TCs).
    act_bytes = 2 * B * C * HWp * 4
    use_grid = force_grid or (B > 1 and act_bytes > (8 << 20))

    if not use_grid:
        vmem = pl.BlockSpec(memory_space=pltpu.MemorySpace.VMEM)
        y3 = pl.pallas_call(
            kernel,
            out_shape=out_shape,
            in_specs=[vmem, vmem],
            out_specs=vmem,
            input_output_aliases={0: 0},
            cost_estimate=cost,
        )(x3, slab)
    else:
        y3 = pl.pallas_call(
            kernel,
            out_shape=out_shape,
            grid_spec=pltpu.PrefetchScalarGridSpec(
                num_scalar_prefetch=0,
                grid=(B,),
                in_specs=[
                    pl.BlockSpec((1, C, HWp), lambda b: (b, 0, 0)),
                    pl.BlockSpec((rows_p, cols_p), lambda b: (0, 0)),  # params stay resident
                ],
                out_specs=pl.BlockSpec((1, C, HWp), lambda b: (b, 0, 0)),
            ),
            input_output_aliases={0: 0},
            cost_estimate=cost,
            compiler_params=pltpu.CompilerParams(
                dimension_semantics=("parallel",),   # shard batch across TCs on v7x
            ),
        )(x3, slab)

    if HWp != HW:
        y3 = y3[:, :, :HW]
    return y3.reshape(B, C, H, W)


# --------------------------------------------------------------------------------------
# Pure-JAX reference (same math, PyTorch parameter layouts)
# --------------------------------------------------------------------------------------

def _se_ref(x, w_reduce, b_reduce, w_expand, b_expand):
    wr = w_reduce.reshape(w_reduce.shape[0], -1)      # (Cr, C)
    we = w_expand.reshape(w_expand.shape[0], -1)      # (C, Cr)
    pooled = jnp.mean(x, axis=(2, 3))                 # (B, C)
    r = jnp.maximum(pooled @ wr.T + b_reduce, 0.0)    # (B, Cr)
    e = r @ we.T + b_expand                           # (B, C)
    gate = jnp.clip(e + 3.0, 0.0, 6.0) / 6.0          # hard_sigmoid
    return x * gate[:, :, None, None]


# --------------------------------------------------------------------------------------
# Main
# --------------------------------------------------------------------------------------

if __name__ == "__main__":
    B, C, H, W = 2, 8, 16, 16
    Cr = make_divisible(C * 0.25, 4)                  # = 4 (se_ratio=0.25, divisor=4)

    key = jax.random.PRNGKey(0)
    k1, k2, k3, k4, k5 = jax.random.split(key, 5)

    x = jax.random.normal(k1, (B, C, H, W), dtype=jnp.float32)
    # Native PyTorch parameter layouts (kernel wrapper handles transpose/packing).
    w_reduce = 0.3 * jax.random.normal(k2, (Cr, C, 1, 1), dtype=jnp.float32)
    b_reduce = 0.1 * jax.random.normal(k3, (Cr,), dtype=jnp.float32)
    w_expand = 0.3 * jax.random.normal(k4, (C, Cr, 1, 1), dtype=jnp.float32)
    b_expand = 0.1 * jax.random.normal(k5, (C,), dtype=jnp.float32)

    # Reference first, so input/output aliasing in the kernel can never interfere with it.
    ref = jax.block_until_ready(_se_ref(x, w_reduce, b_reduce, w_expand, b_expand))

    # Path 1: fused, single-step (toy working set).
    out = jax.block_until_ready(ghost_bottleneck_se(x, w_reduce, b_reduce, w_expand, b_expand))
    assert out.shape == (B, C, H, W)
    assert jnp.allclose(out, ref, atol=1e-5, rtol=1e-5), "no-grid path mismatch vs reference"

    # Path 2: per-image grid (production-shape structure), forced here for coverage.
    out_g = jax.block_until_ready(
        ghost_bottleneck_se(x, w_reduce, b_reduce, w_expand, b_expand, force_grid=True))
    assert jnp.allclose(out_g, ref, atol=1e-5, rtol=1e-5), "grid path mismatch vs reference"

    print("KERNEL_OK")
</pallas_src>

<mosaic_0001>
module attributes {stable_mosaic.version = 11 : i64} {
  func.func @_se_kernel(%arg0: memref<2x8x256xf32, #tpu.memory_space<vmem>>, %arg1: memref<16x128xf32, #tpu.memory_space<vmem>>, %arg2: memref<2x8x256xf32, #tpu.memory_space<vmem>>) attributes {dimension_semantics = [], scalar_prefetch = 0 : i64, scratch_operands = 0 : i64, tpu.core_type = #tpu.core_type<tc>} {
    %c0 = arith.constant 0 : index
    %c0_0 = arith.constant 0 : index
    %c0_1 = arith.constant 0 : index
    %0 = vector.load %arg0[%c0, %c0_0, %c0_1] : memref<2x8x256xf32, #tpu.memory_space<vmem>>, vector<2x8x256xf32>
    %cst = arith.constant dense<0.000000e+00> : vector<2x8xf32>
    %1 = vector.multi_reduction <add>, %0, %cst [2] : vector<2x8x256xf32> to vector<2x8xf32>
    %c0_2 = arith.constant 0 : index
    %c0_3 = arith.constant 0 : index
    %2 = vector.load %arg1[%c0_2, %c0_3] : memref<16x128xf32, #tpu.memory_space<vmem>>, vector<8x4xf32>
    %c8 = arith.constant 8 : index
    %c0_4 = arith.constant 0 : index
    %3 = vector.load %arg1[%c8, %c0_4] : memref<16x128xf32, #tpu.memory_space<vmem>>, vector<1x4xf32>
    %c9 = arith.constant 9 : index
    %c0_5 = arith.constant 0 : index
    %4 = vector.load %arg1[%c9, %c0_5] : memref<16x128xf32, #tpu.memory_space<vmem>>, vector<4x8xf32>
    %c13 = arith.constant 13 : index
    %c0_6 = arith.constant 0 : index
    %5 = vector.load %arg1[%c13, %c0_6] : memref<16x128xf32, #tpu.memory_space<vmem>>, vector<1x8xf32>
    %6 = vector.shape_cast %1 : vector<2x8xf32> to vector<2x8x1xf32>
    %7 = vector.shape_cast %2 : vector<8x4xf32> to vector<1x8x4xf32>
    %8 = vector.broadcast %6 : vector<2x8x1xf32> to vector<2x8x4xf32>
    %9 = vector.broadcast %7 : vector<1x8x4xf32> to vector<2x8x4xf32>
    %10 = arith.mulf %8, %9 : vector<2x8x4xf32>
    %cst_7 = arith.constant dense<0.000000e+00> : vector<2x4xf32>
    %11 = vector.multi_reduction <add>, %10, %cst_7 [1] : vector<2x8x4xf32> to vector<2x4xf32>
    %12 = vector.broadcast %3 : vector<1x4xf32> to vector<2x4xf32>
    %13 = arith.addf %11, %12 : vector<2x4xf32>
    %cst_8 = arith.constant 0.000000e+00 : f32
    %14 = vector.broadcast %cst_8 : f32 to vector<2x4xf32>
    %15 = arith.maximumf %13, %14 : vector<2x4xf32>
    %16 = vector.shape_cast %15 : vector<2x4xf32> to vector<2x4x1xf32>
    %17 = vector.shape_cast %4 : vector<4x8xf32> to vector<1x4x8xf32>
    %18 = vector.broadcast %16 : vector<2x4x1xf32> to vector<2x4x8xf32>
    %19 = vector.broadcast %17 : vector<1x4x8xf32> to vector<2x4x8xf32>
    %20 = arith.mulf %18, %19 : vector<2x4x8xf32>
    %cst_9 = arith.constant dense<0.000000e+00> : vector<2x8xf32>
    %21 = vector.multi_reduction <add>, %20, %cst_9 [1] : vector<2x4x8xf32> to vector<2x8xf32>
    %22 = vector.broadcast %5 : vector<1x8xf32> to vector<2x8xf32>
    %23 = arith.addf %21, %22 : vector<2x8xf32>
    %cst_10 = arith.constant 3.000000e+00 : f32
    %24 = vector.broadcast %cst_10 : f32 to vector<2x8xf32>
    %25 = arith.addf %23, %24 : vector<2x8xf32>
    %cst_11 = arith.constant 0.000000e+00 : f32
    %cst_12 = arith.constant 6.000000e+00 : f32
    %26 = vector.broadcast %cst_11 : f32 to vector<2x8xf32>
    %27 = arith.maximumf %26, %25 : vector<2x8xf32>
    %28 = vector.broadcast %cst_12 : f32 to vector<2x8xf32>
    %29 = arith.minimumf %28, %27 : vector<2x8xf32>
    %cst_13 = arith.constant 0.166666672 : f32
    %30 = vector.broadcast %cst_13 : f32 to vector<2x8xf32>
    %31 = arith.mulf %29, %30 : vector<2x8xf32>
    %32 = vector.shape_cast %31 : vector<2x8xf32> to vector<2x8x1xf32>
    %33 = vector.broadcast %32 : vector<2x8x1xf32> to vector<2x8x256xf32>
    %34 = arith.mulf %0, %33 : vector<2x8x256xf32>
    %c0_14 = arith.constant 0 : index
    %c0_15 = arith.constant 0 : index
    %c0_16 = arith.constant 0 : index
    %35 = vector.load %arg2[%c0_14, %c0_15, %c0_16] : memref<2x8x256xf32, #tpu.memory_space<vmem>>, vector<2x8x256xf32>
    tpu.vector_store %arg2[%c0_14, %c0_15, %c0_16], %34 {strides = array<i32>} : memref<2x8x256xf32, #tpu.memory_space<vmem>>, vector<2x8x256xf32>,
    return
  }
}

</mosaic_0001>

<llo_original>
// kernel: ghost_bottleneck_se.1
$region0: #{ghost_bottleneck_se.1}
  #allocation0 [shape = 'u32[]', space=smem, size = 0x4, offset = 0x4, fixed_abs, tag = 'smem constant byte address 0x4 - core index']
  #allocation1 [shape = 'u32[144,128]{1,0:T(1,128)}', space=vmem, size = 0x12000, scoped, tag = 'internal scratch']
  %s0 = inlined_call_operand.vmem [shape: f32[2,8,256], index: 0, kind: input, shape index: {}, may-alias: {0,2}]
  %s1 = inlined_call_operand.vmem [shape: f32[16,128], index: 1, kind: input, shape index: {}]
  %s2 = inlined_call_operand.vmem [shape: f32[2,8,256], index: 2, kind: output, shape index: {}, may-alias: {0,2}]
  %s3 = sld [smem:[#allocation0]]
  $region18: #{ghost_bottleneck_se.1} parent=0
    _
  %s5 = ssub.s32 1, %s3
  %s6 = scalar_select 0, %s5, %s3
  // Predicated region
  $region2: #{ghost_bottleneck_se.1} parent=0 // pred_check
    _
  $region3: #{ghost_bottleneck_se.1} parent=0 // pred_check_branch
    %8 = sbr.rel (0) target = $region5
  $region4: #{ghost_bottleneck_se.1} parent=0 // pred_region
    _
  $region5: #{ghost_bottleneck_se.1} parent=0 // pred_fallthru
    _
  // Predicated region
  $region6: #{ghost_bottleneck_se.1} parent=0 // pred_check
    _
  $region7: #{ghost_bottleneck_se.1} parent=0 // pred_check_branch
    %10 = sbr.rel (0) target = $region9
  $region8: #{ghost_bottleneck_se.1} parent=0 // pred_region
    _
  $region9: #{ghost_bottleneck_se.1} parent=0 // pred_fallthru
    _
  %v11 = vld [vmem:[%s0] sm:$0xff]
  %v12 = vld [vmem:[%s0 + $0x8] sm:$0xff]
  %v13 = vld [vmem:[%s0 + $0x10] sm:$0xff]
  %v14 = vld [vmem:[%s0 + $0x18] sm:$0xff]
  %v15 = vadd.f32 %v11, %v12
  %16 = vadd.xlane.f32.xlu0 %v15
  %v17 = vpop.xlane.xlu0 %16
  %v18 = vadd.f32 %v13, %v14
  %19 = vadd.xlane.f32.xlu0 %v18
  %v20 = vpop.xlane.xlu0 %19
  %v21 = vld [vmem:[%s1] sm:$0xff]
  %v22 = vld [vmem:[%s1 + $0x8] sm:$0x1]
  %v23 = vld [vmem:[%s1 + $0x9] sm:$0xf]
  %v24 = vld [vmem:[%s1 + $0xd] sm:$0x1]
  %v25 = vmul.f32 %v17, %v21
  %v26 = vmul.f32 %v20, %v21
  %vm27 = vcmask 31744
  %v28 = vsel %vm27, %v25, 0.0
  %v29 = vrot.slane %v28, 4
  %v30 = vadd.f32 %v28, %v29
  %v31 = vrot.slane %v30, 2
  %v32 = vadd.f32 %v30, %v31
  %v33 = vrot.slane %v32, 1
  %v34 = vadd.f32 %v32, %v33
  %v35 = vsel %vm27, %v26, 0.0
  %v36 = vrot.slane %v35, 4
  %v37 = vadd.f32 %v35, %v36
  %v38 = vrot.slane %v37, 2
  %v39 = vadd.f32 %v37, %v38
  %v40 = vrot.slane %v39, 1
  %v41 = vadd.f32 %v39, %v40
  %v42 = vlaneseq
  %v43 = vshrl.u32 %v42, 7
  %v44 = vsub.s32 0, %v43
  %v45 = vrot.slane %v22, %v44
  %v46 = vadd.f32 %v34, %v45
  %v47 = vadd.f32 %v41, %v45
  %v48 = vmax.f32 %v46, 0.0
  %v49 = vmax.f32 %v47, 0.0
  %v50 = vlaneseq
  %v51 = vshrl.u32 %v50, 7
  %v52 = vsub.s32 0, %v51
  %v53 = vrot.slane %v48, %v52
  %55 = vbcast.lane.b32.xlu0 %v53, 256
  %v56 = vpop.permute.xlu0 %55
  %v57 = vlaneseq
  %v58 = vshrl.u32 %v57, 7
  %v59 = vsub.s32 0, %v58
  %v60 = vrot.slane %v49, %v59
  %62 = vbcast.lane.b32.xlu0 %v60, 256
  %v63 = vpop.permute.xlu0 %62
  %v64 = vmul.f32 %v56, %v23
  %v65 = vmul.f32 %v63, %v23
  %vm66 = vcmask 60416
  %v67 = vsel %vm66, %v64, 0.0
  %v68 = vrot.slane %v67, 4
  %v69 = vadd.f32 %v67, %v68
  %v70 = vrot.slane %v69, 2
  %v71 = vadd.f32 %v69, %v70
  %v72 = vrot.slane %v71, 1
  %v73 = vadd.f32 %v71, %v72
  %v74 = vsel %vm66, %v65, 0.0
  %v75 = vrot.slane %v74, 4
  %v76 = vadd.f32 %v74, %v75
  %v77 = vrot.slane %v76, 2
  %v78 = vadd.f32 %v76, %v77
  %v79 = vrot.slane %v78, 1
  %v80 = vadd.f32 %v78, %v79
  %v81 = vlaneseq
  %v82 = vshrl.u32 %v81, 7
  %v83 = vsub.s32 0, %v82
  %v84 = vrot.slane %v24, %v83
  %v85 = vadd.f32 %v73, %v84
  %v86 = vadd.f32 %v80, %v84
  %v87 = vadd.f32 %v85, 3.0
  %v88 = vadd.f32 %v86, 3.0
  %v89 = vmax.f32 %v87, 0.0
  %v90 = vmax.f32 %v88, 0.0
  %v91 = vmin.f32 %v89, 6.0
  %v92 = vmin.f32 %v90, 6.0
  %v93 = vmul.f32 %v91, 0.16666667
  %v94 = vmul.f32 %v92, 0.16666667
  %v95 = vlaneseq
  %v96 = vshrl.u32 %v95, 7
  %v97 = vsub.s32 0, %v96
  %v98 = vrot.slane %v93, %v97
  %100 = vbcast.lane.b32.xlu0 %v98, 256
  %v101 = vpop.permute.xlu0 %100
  %v102 = vlaneseq
  %v103 = vshrl.u32 %v102, 7
  %v104 = vsub.s32 0, %v103
  %v105 = vrot.slane %v94, %v104
  %107 = vbcast.lane.b32.xlu0 %v105, 256
  %v108 = vpop.permute.xlu0 %107
  %v109 = vmul.f32 %v11, %v101
  %v110 = vmul.f32 %v12, %v101
  %v111 = vmul.f32 %v13, %v108
  %v112 = vmul.f32 %v14, %v108
  %113 = vst [vmem:[%s2] sm:$0xff] %v109
  %114 = vst [vmem:[%s2 + $0x8] sm:$0xff] %v110
  %115 = vst [vmem:[%s2 + $0x10] sm:$0xff] %v111
  %116 = vst [vmem:[%s2 + $0x18] sm:$0xff] %v112
  // Predicated region
  $region10: #{ghost_bottleneck_se.1} parent=0 // pred_check
    _
  $region11: #{ghost_bottleneck_se.1} parent=0 // pred_check_branch
    %118 = sbr.rel (0) target = $region13
  $region12: #{ghost_bottleneck_se.1} parent=0 // pred_region
    _
  $region13: #{ghost_bottleneck_se.1} parent=0 // pred_fallthru
    _
  // Predicated region
  $region14: #{ghost_bottleneck_se.1} parent=0 // pred_check
    _
  $region15: #{ghost_bottleneck_se.1} parent=0 // pred_check_branch
    %120 = sbr.rel (0) target = $region17
  $region16: #{ghost_bottleneck_se.1} parent=0 // pred_region
    _
  $region17: #{ghost_bottleneck_se.1} parent=0 // pred_fallthru
    _

</llo_original>
